<compile_context>
chip_gen: v6e
topology: v6e:2x2x1
jax: 0.10.0
libtpu: 0.0.40
codegen_flags: <defaults>
</compile_context>

<pallas_src>
import functools

import jax
import jax.numpy as jnp
from jax import lax
from jax.experimental import pallas as pl
from jax.experimental.pallas import tpu as pltpu

_NEG_INF = float("-inf")


def _tile_max(x_ref, b_ref, *, ch):
    """Max over the sequence axis of one (TB, TS, TH) tile -> (TB, TH).

    b_ref (optional) is a (TB, TS, 1) +/-inf bias in x.dtype: masked-out rows
    carry -inf, so jnp.minimum reproduces masked_fill(~mask, -inf) exactly.
    """
    tb, ts, th = x_ref.shape

    def chunk(start, size):
        xs = x_ref[:, pl.ds(start, size), :]
        if b_ref is not None:
            xs = jnp.minimum(xs, b_ref[:, pl.ds(start, size), :])
        return jnp.max(xs, axis=1)  # one XLU reduce per chunk -> (TB, TH)

    n_full = ts // ch
    rem = ts - n_full * ch

    if n_full == 0:
        return chunk(0, rem)

    acc = chunk(0, ch)  # seed the accumulator with the first chunk
    if n_full > 1:
        # Cap unroll so in-flight chunks + the (TB, TH) accumulator stay well
        # under 64 vregs (avoid spill-bound behavior once tiles are large).
        chunk_vregs = max(1, (tb * ch * th + 1023) // 1024)
        unroll = max(1, min(8, 32 // chunk_vregs))

        def body(c, a):
            start = pl.multiple_of(c * ch, ch)
            return jnp.maximum(a, chunk(start, ch))

        acc = lax.fori_loop(1, n_full, body, acc, unroll=unroll)

    if rem:
        acc = jnp.maximum(acc, chunk(n_full * ch, rem))
    return acc


def _masked_kernel(x_ref, b_ref, o_ref, *, s_axis, ch):
    @pl.when(pl.program_id(s_axis) == 0)
    def _init():
        o_ref[...] = jnp.full(o_ref.shape, _NEG_INF, dtype=o_ref.dtype)

    o_ref[...] = jnp.maximum(o_ref[...], _tile_max(x_ref, b_ref, ch=ch))


def _unmasked_kernel(x_ref, o_ref, *, s_axis, ch):
    @pl.when(pl.program_id(s_axis) == 0)
    def _init():
        o_ref[...] = jnp.full(o_ref.shape, _NEG_INF, dtype=o_ref.dtype)

    o_ref[...] = jnp.maximum(o_ref[...], _tile_max(x_ref, None, ch=ch))


def max_seq_reduce(x, mask=None, *, target_tile_bytes=16 * 1024 * 1024):
    """Equivalent of MaxSeqReduce.forward.

    Args:
      x:    (B, S, H) floating-point array.
      mask: optional (B, S) bool/int array; False positions are filled with
            -inf before the max over the sequence dimension.
    Returns:
      (B, H) array = torch.max(masked_fill(x, ~mask, -inf), dim=1).values.
    """
    assert x.ndim == 3, f"Input sequence must be 3D, but got shape: {x.shape}"
    assert jnp.issubdtype(x.dtype, jnp.floating), "expects floating-point input"
    B, S, H = x.shape
    assert S >= 1, "sequence dimension must be non-empty"

    masked = mask is not None
    if masked:
        assert mask.shape == (B, S), f"mask must be (B, S), got {mask.shape}"
        keep = mask.astype(bool)[:, :, None]
        bias = jnp.where(keep,
                         jnp.asarray(jnp.inf, dtype=x.dtype),
                         jnp.asarray(-jnp.inf, dtype=x.dtype))  # (B, S, 1)

    itemsize = jnp.dtype(x.dtype).itemsize
    sub = 8 * max(1, 4 // itemsize)  # sublane granularity for this dtype
    ch = sub                         # in-kernel S chunk size

    # --- tile selection: prefer full-B, full-H blocks (no padding, fully
    # --- contiguous per-row DMA, no H grid axis). The (B, S, 1) mask block is
    # --- lane-padded to 128 in VMEM, so budget it as 128 lanes per row.
    bias_lane_bytes = 128 * itemsize if masked else 0

    def ts_cap(tb, th):
        per_row = tb * (th * itemsize + bias_lane_bytes)
        return target_tile_bytes // per_row

    TB, TH = B, H
    if ts_cap(TB, TH) < sub and H % 128 == 0:
        cands = [t for t in range(128, H, 128)
                 if H % t == 0 and ts_cap(TB, t) >= sub]
        TH = max(cands) if cands else 128
    if ts_cap(TB, TH) < sub and B % 8 == 0:
        cands = [t for t in range(8, B, 8)
                 if B % t == 0 and ts_cap(t, TH) >= sub]
        TB = max(cands) if cands else 8
    # If it still exceeds the soft budget we proceed anyway (correctness
    # first); the VMEM limit below is derived from the actual tile sizes.

    cap = ts_cap(TB, TH)
    if cap >= S or S <= sub:
        TS, n_s, s_rem = S, 1, 0               # whole sequence in one block
    else:
        TS = max(sub, (cap // sub) * sub)       # multiple of the sublane size
        n_s = S // TS                           # full blocks only
        s_rem = S - n_s * TS                    # ragged tail handled outside

    n_b, n_h = B // TB, H // TH

    # v7x megacore: if the parallel extent collapsed to one (B, H) tile but
    # there are many sequence steps, shard the S blocks over a leading 2-way
    # parallel axis (the two halves overlap by at most one block when n_s is
    # odd, which is harmless for a max reduction).
    split = (n_b * n_h == 1) and (n_s >= 4)

    x_tile_bytes = TB * TS * TH * itemsize
    bias_tile_bytes = TB * TS * 128 * itemsize if masked else 0
    out_tile_bytes = TB * max(TH, 128) * itemsize
    need = 2 * (x_tile_bytes + bias_tile_bytes) + 2 * out_tile_bytes + (2 << 20)
    vmem_limit = int(min(96 * 2**20, max(32 * 2**20, need + need // 4)))

    cost = pl.CostEstimate(
        flops=2 * B * S * H,
        transcendentals=0,
        bytes_accessed=(B * S * H * itemsize
                        + (B * S * itemsize if masked else 0)
                        + B * H * itemsize),
    )

    if split:
        n_sp = -(-n_s // 2)          # ceil(n_s / 2) steps per half
        off = n_s - n_sp             # second half covers the last n_sp blocks
        grid = (2, n_b, n_h, n_sp)
        s_axis = 3
        x_spec = pl.BlockSpec(
            (TB, TS, TH), lambda ic, ib, ih, is_: (ib, ic * off + is_, ih))
        b_spec = pl.BlockSpec(
            (TB, TS, 1), lambda ic, ib, ih, is_: (ib, ic * off + is_, 0))
        out_spec = pl.BlockSpec(
            (1, TB, TH), lambda ic, ib, ih, is_: (ic, ib, ih))
        out_shape = jax.ShapeDtypeStruct((2, B, H), x.dtype)
        semantics = ("parallel", "parallel", "parallel", "arbitrary")
    else:
        grid = (n_b, n_h, n_s)
        s_axis = 2
        x_spec = pl.BlockSpec((TB, TS, TH), lambda ib, ih, is_: (ib, is_, ih))
        b_spec = pl.BlockSpec((TB, TS, 1), lambda ib, ih, is_: (ib, is_, 0))
        out_spec = pl.BlockSpec((TB, TH), lambda ib, ih, is_: (ib, ih))
        out_shape = jax.ShapeDtypeStruct((B, H), x.dtype)
        semantics = ("parallel", "parallel", "arbitrary")

    compiler_params = pltpu.CompilerParams(
        dimension_semantics=semantics,
        vmem_limit_bytes=vmem_limit,
    )

    if masked:
        kernel = functools.partial(_masked_kernel, s_axis=s_axis, ch=ch)
        in_specs, args = [x_spec, b_spec], (x, bias)
    else:
        kernel = functools.partial(_unmasked_kernel, s_axis=s_axis, ch=ch)
        in_specs, args = [x_spec], (x,)

    out = pl.pallas_call(
        kernel,
        out_shape=out_shape,
        grid_spec=pltpu.PrefetchScalarGridSpec(
            num_scalar_prefetch=0,
            grid=grid,
            in_specs=in_specs,
            out_specs=out_spec,
        ),
        compiler_params=compiler_params,
        cost_estimate=cost,
    )(*args)

    if split:
        out = jnp.max(out, axis=0)

    # Fold in the (< TS)-row sequence tail. Kept outside the kernel so that no
    # padded/sliced HBM copy of x is ever materialized; XLA fuses the slice
    # directly into this tiny reduce, so the tail rows are still read once.
    if s_rem:
        x_tail = x[:, n_s * TS:, :]
        if masked:
            keep_tail = mask.astype(bool)[:, n_s * TS:, None]
            tail = jnp.max(
                jnp.where(keep_tail, x_tail, jnp.asarray(-jnp.inf, x.dtype)),
                axis=1)
        else:
            tail = jnp.max(x_tail, axis=1)
        out = jnp.maximum(out, tail)

    return out


if __name__ == "__main__":
    key = jax.random.PRNGKey(0)
    k1, k2, k3, k4 = jax.random.split(key, 4)

    def ref_reduce(x, mask=None):
        if mask is None:
            return jnp.max(x, axis=1)
        return jnp.max(jnp.where(mask[:, :, None], x, -jnp.inf), axis=1)

    # Case 1: the small shape implied by the module (batch=2, seq=8, hidden=32).
    B, S, H = 2, 8, 32
    x = jax.random.normal(k1, (B, S, H), dtype=jnp.float32)
    mask = jax.random.bernoulli(k2, p=0.7, shape=(B, S)).at[:, 0].set(True)

    out = jax.block_until_ready(max_seq_reduce(x, mask))
    assert out.shape == (B, H)
    assert jnp.array_equal(out, ref_reduce(x, mask)), "masked mismatch (small)"
    out_nm = jax.block_until_ready(max_seq_reduce(x))
    assert jnp.array_equal(out_nm, ref_reduce(x)), "unmasked mismatch (small)"

    # Case 1b: odd sequence length (exercises the partial in-kernel chunk).
    Bb, Sb, Hb = 2, 13, 32
    xb = jax.random.normal(k3, (Bb, Sb, Hb), dtype=jnp.float32)
    maskb = jax.random.bernoulli(k4, p=0.6, shape=(Bb, Sb)).at[:, 0].set(True)
    outb = jax.block_until_ready(max_seq_reduce(xb, maskb))
    assert jnp.array_equal(outb, ref_reduce(xb, maskb)), "masked mismatch (odd S)"

    # Case 2: single-step full tile (B, S, H untiled; chunked fori_loop).
    B2, S2, H2 = 4, 640, 384
    x2 = jax.random.normal(k3, (B2, S2, H2), dtype=jnp.float32)
    mask2 = jax.random.bernoulli(k4, p=0.6, shape=(B2, S2)).at[:, 0].set(True)
    out2 = jax.block_until_ready(max_seq_reduce(x2, mask2))
    assert jnp.array_equal(out2, ref_reduce(x2, mask2)), "masked mismatch (full tile)"
    out2_nm = jax.block_until_ready(max_seq_reduce(x2))
    assert jnp.array_equal(out2_nm, ref_reduce(x2)), "unmasked mismatch (full tile)"

    # Case 3: small per-buffer budget forces sequence tiling, the fused ragged
    # tail and the 2-way megacore split (grid (2, 1, 1, n_s/2)).
    B3, S3, H3 = 2, 1234, 256
    x3 = jax.random.normal(k1, (B3, S3, H3), dtype=jnp.float32)
    mask3 = jax.random.bernoulli(k2, p=0.5, shape=(B3, S3)).at[:, 0].set(True)
    out3 = jax.block_until_ready(
        max_seq_reduce(x3, mask3, target_tile_bytes=256 * 1024))
    assert jnp.array_equal(out3, ref_reduce(x3, mask3)), "masked mismatch (tiled)"
    out3_nm = jax.block_until_ready(
        max_seq_reduce(x3, target_tile_bytes=256 * 1024))
    assert jnp.array_equal(out3_nm, ref_reduce(x3)), "unmasked mismatch (tiled)"

    print("KERNEL_OK")
</pallas_src>

<mosaic_0001>
module attributes {stable_mosaic.version = 11 : i64} {
  func.func @_masked_kernel(%arg0: i32, %arg1: i32, %arg2: i32, %arg3: memref<2x8x32xf32, #tpu.memory_space<vmem>>, %arg4: memref<2x8x1xf32, #tpu.memory_space<vmem>>, %arg5: memref<2x32xf32, #tpu.memory_space<vmem>>) attributes {dimension_semantics = [#tpu.dimension_semantics<parallel>, #tpu.dimension_semantics<parallel>, #tpu.dimension_semantics<arbitrary>], iteration_bounds = array<i64: 1, 1, 1>, scalar_prefetch = 0 : i64, scratch_operands = 0 : i64, tpu.core_type = #tpu.core_type<tc>, window_params = [{transform_indices = @transform_0, window_bounds = array<i64: 2, 8, 32>}, {transform_indices = @transform_1, window_bounds = array<i64: 2, 8, 1>}, {transform_indices = @transform_2, window_bounds = array<i64: 2, 32>}]} {
    %c0_i32 = arith.constant 0 : i32
    %0 = arith.cmpi eq, %arg2, %c0_i32 : i32
    %1 = arith.extui %0 : i1 to i32
    %c0_i32_0 = arith.constant 0 : i32
    %2 = arith.cmpi ne, %1, %c0_i32_0 : i32
    scf.if %2 {
      %cst_10 = arith.constant 0xFF800000 : f32
      %11 = vector.broadcast %cst_10 : f32 to vector<2x32xf32>
      %c0_11 = arith.constant 0 : index
      %c0_12 = arith.constant 0 : index
      %12 = vector.load %arg5[%c0_11, %c0_12] : memref<2x32xf32, #tpu.memory_space<vmem>>, vector<2x32xf32>
      tpu.vector_store %arg5[%c0_11, %c0_12], %11 {strides = array<i32>} : memref<2x32xf32, #tpu.memory_space<vmem>>, vector<2x32xf32>,
    } else {
    }
    %c0 = arith.constant 0 : index
    %c0_1 = arith.constant 0 : index
    %3 = vector.load %arg5[%c0, %c0_1] : memref<2x32xf32, #tpu.memory_space<vmem>>, vector<2x32xf32>
    %c0_2 = arith.constant 0 : index
    %c0_3 = arith.constant 0 : index
    %c0_4 = arith.constant 0 : index
    %4 = vector.load %arg3[%c0_2, %c0_3, %c0_4] : memref<2x8x32xf32, #tpu.memory_space<vmem>>, vector<2x8x32xf32>
    %c0_5 = arith.constant 0 : index
    %c0_6 = arith.constant 0 : index
    %c0_7 = arith.constant 0 : index
    %5 = vector.load %arg4[%c0_5, %c0_6, %c0_7] : memref<2x8x1xf32, #tpu.memory_space<vmem>>, vector<2x8x1xf32>
    %6 = vector.broadcast %5 : vector<2x8x1xf32> to vector<2x8x32xf32>
    %7 = arith.minimumf %4, %6 : vector<2x8x32xf32>
    %cst = arith.constant dense<0xFF800000> : vector<2x32xf32>
    %8 = vector.multi_reduction <maximumf>, %7, %cst [1] : vector<2x8x32xf32> to vector<2x32xf32>
    %9 = arith.maximumf %3, %8 : vector<2x32xf32>
    %c0_8 = arith.constant 0 : index
    %c0_9 = arith.constant 0 : index
    %10 = vector.load %arg5[%c0_8, %c0_9] : memref<2x32xf32, #tpu.memory_space<vmem>>, vector<2x32xf32>
    tpu.vector_store %arg5[%c0_8, %c0_9], %9 {strides = array<i32>} : memref<2x32xf32, #tpu.memory_space<vmem>>, vector<2x32xf32>,
    return
  }
  func.func @transform_0(%arg0: i32, %arg1: i32, %arg2: i32) -> (i32, i32, i32) {
    %c0_i32 = arith.constant 0 : i32
    return %arg0, %arg2, %arg1 : i32, i32, i32
  }
  func.func @transform_1(%arg0: i32, %arg1: i32, %arg2: i32) -> (i32, i32, i32) {
    %c0_i32 = arith.constant 0 : i32
    %c0_i32_0 = arith.constant 0 : i32
    return %arg0, %arg2, %c0_i32 : i32, i32, i32
  }
  func.func @transform_2(%arg0: i32, %arg1: i32, %arg2: i32) -> (i32, i32) {
    %c0_i32 = arith.constant 0 : i32
    return %arg0, %arg1 : i32, i32
  }
}

</mosaic_0001>

<llo_original>
// kernel: tpu_custom_call.1
$region0: #{tpu_custom_call.1}
  #allocation0 [shape = 'u32[]', space=smem, size = 0x4, offset = 0x4, fixed_abs, tag = 'smem constant byte address 0x4 - core index']
  #allocation1 [shape = 'u32[144,128]{1,0:T(1,128)}', space=vmem, size = 0x12000, scoped, tag = 'internal scratch']
  %s0 = inlined_call_operand.vmem [shape: f32[2,8,32], index: 0, kind: input, shape index: {}]
  %s1 = inlined_call_operand.vmem [shape: f32[2,8,1], index: 1, kind: input, shape index: {}]
  %s2 = inlined_call_operand.hbm [shape: f32[2,32], index: 2, kind: output, shape index: {}]
  %s3 = sld [smem:[#allocation0]]
  $region22: #{tpu_custom_call.1} parent=0
    _
  %s5 = ssub.s32 1, %s3
  %s6 = scalar_select 0, %s5, %s3
  $region1: #{tpu_custom_call.1} parent=0
    #allocation2 [shape = 'u8[1024]{0}', space=vmem, size = 0x400, scoped, tag = 'output window, operand 0, single buffered']
    #allocation3 [shape = 's32[1]{0}', space=sflag, size = 0x4, scoped, tag = 'scoped memory for tpu_custom_call.1']
    %7 = vsyncpa [#allocation3], 0
    // Predicated region
    $region2: #{tpu_custom_call.1} parent=1 // pred_check
      _
    $region3: #{tpu_custom_call.1} parent=1 // pred_check_branch
      %9 = sbr.rel (0) target = $region5
    $region4: #{tpu_custom_call.1} parent=1 // pred_region
      _
    $region5: #{tpu_custom_call.1} parent=1 // pred_fallthru
      _
    // Predicated region
    $region6: #{tpu_custom_call.1} parent=1 // pred_check
      _
    $region7: #{tpu_custom_call.1} parent=1 // pred_check_branch
      %11 = sbr.rel (0) target = $region9
    $region8: #{tpu_custom_call.1} parent=1 // pred_region
      _
    $region9: #{tpu_custom_call.1} parent=1 // pred_fallthru
      _
    %p12 = scmp.eq.s32.totalorder 0, 0
    // Predicated region
    $region10: #{tpu_custom_call.1} parent=1 // pred_check
      %p13 = pneg %p12
    $region11: #{tpu_custom_call.1} parent=1 // pred_check_branch
      %15 = sbr.rel (%p13) target = $region13
    $region12: #{tpu_custom_call.1} parent=1 // pred_region
      %vm16 = vcmask 254976
      %17 = vst.msk [vmem:[#allocation2] sm:$0x3] %vm16, -inf
    $region13: #{tpu_custom_call.1} parent=1 // pred_fallthru
      _
    %v18 = vld [vmem:[#allocation2] sm:$0x3]
    %v19 = vld [vmem:[%s0] sm:$0xff]
    %v20 = vld [vmem:[%s0 + $0x8] sm:$0xff]
    %v21 = vld [vmem:[%s1] sm:$0xff]
    %v22 = vld [vmem:[%s1 + $0x8] sm:$0xff]
    %24 = vset.pattern.permute.xlu0 0
    %25 = vperm.xlu0 %24, %v21
    %v26 = vpop.permute.xlu0 %25
    %29 = vset.pattern.permute.xlu0 0
    %30 = vperm.xlu0 %29, %v22
    %v31 = vpop.permute.xlu0 %30
    %v33 = vmin.f32 %v19, %v26
    %v34 = vmin.f32 %v20, %v31
    %vm35 = vcmask 261120
    %v36 = vsel %vm35, %v33, -inf
    %v37 = vrot.slane %v36, 4
    %v38 = vmax.f32 %v36, %v37
    %v39 = vrot.slane %v38, 2
    %v40 = vmax.f32 %v38, %v39
    %v41 = vrot.slane %v40, 1
    %v42 = vmax.f32 %v40, %v41
    %v43 = vsel %vm35, %v34, -inf
    %v44 = vrot.slane %v43, 4
    %v45 = vmax.f32 %v43, %v44
    %v46 = vrot.slane %v45, 2
    %v47 = vmax.f32 %v45, %v46
    %v48 = vrot.slane %v47, 1
    %v49 = vmax.f32 %v47, %v48
    %vm52 = vcmask 1041409
    %v53 = vsel %vm52, %v49, %v42
    %v55 = vmax.f32 %v18, %v53
    %vm56 = vcmask 254976
    %57 = vst.msk [vmem:[#allocation2] sm:$0x3] %vm56, %v55
    // Predicated region
    $region14: #{tpu_custom_call.1} parent=1 // pred_check
      _
    $region15: #{tpu_custom_call.1} parent=1 // pred_check_branch
      %59 = sbr.rel (0) target = $region17
    $region16: #{tpu_custom_call.1} parent=1 // pred_region
      %s61 = ssub.s32 32, 32
      %62 = vsyncadd [#allocation3], %s61
      %s64 = sshll.u32 [#allocation2], 4
      %s65 = int_to_ptr.vmem [resolvable:$true] %s64
      %67 = dma.vmem_to_hbm [thread:$0]  %s65, 32, %s2, [#allocation3]
    $region17: #{tpu_custom_call.1} parent=1 // pred_fallthru
      _
    // Predicated region
    $region18: #{tpu_custom_call.1} parent=1 // pred_check
      _
    $region19: #{tpu_custom_call.1} parent=1 // pred_check_branch
      %69 = sbr.rel (0) target = $region21
    $region20: #{tpu_custom_call.1} parent=1 // pred_region
      %70 = dma.done [#allocation3], 32
    $region21: #{tpu_custom_call.1} parent=1 // pred_fallthru
      _
    %71 = vsyncpa [#allocation3], 1

</llo_original>
